<compile_context>
chip_gen: v7x
topology: tpu7x:2x2x1
jax: 0.10.0
libtpu: 0.0.40
codegen_flags: <defaults>
</compile_context>

<pallas_src>
import functools

import jax
import jax.numpy as jnp
from jax.experimental import pallas as pl
from jax.experimental.pallas import tpu as pltpu


# ----------------------------------------------------------------------------
# Parameter initialization (deterministic, mirrors orthogonal_init + zero bias)
# ----------------------------------------------------------------------------
def orthogonal_(key, shape, gain=1.0, dtype=jnp.float32):
    """Orthogonal init matching torch.nn.init.orthogonal_ semantics.

    `shape` is the PyTorch weight shape (out_features, in_features). Returns an
    array of that shape with orthonormal rows/cols scaled by `gain`.
    """
    rows, cols = shape
    flat_shape = (max(rows, cols), min(rows, cols))
    a = jax.random.normal(key, flat_shape, dtype=jnp.float32)
    q, r = jnp.linalg.qr(a)
    d = jnp.sign(jnp.diagonal(r))          # sign correction, like PyTorch
    q = q * d[None, :]
    if rows < cols:
        q = q.T
    return (gain * q[:rows, :cols]).astype(dtype)


def make_params(key, state_dim, hidden_width, action_dim):
    k1, k2, k3 = jax.random.split(key, 3)
    # PyTorch layout: (out, in). We transpose to (in, out) for the kernel.
    w1 = orthogonal_(k1, (hidden_width, state_dim), gain=1.0).T
    w2 = orthogonal_(k2, (hidden_width, hidden_width), gain=1.0).T
    w3 = orthogonal_(k3, (2 * action_dim, hidden_width), gain=0.01).T
    b1 = jnp.zeros((1, hidden_width), jnp.float32)
    b2 = jnp.zeros((1, hidden_width), jnp.float32)
    b3 = jnp.zeros((1, 2 * action_dim), jnp.float32)
    return w1, b1, w2, b2, w3, b3


# ----------------------------------------------------------------------------
# Helpers
# ----------------------------------------------------------------------------
def _round_up(n, m):
    return ((n + m - 1) // m) * m


def _cdiv(a, b):
    return -(-a // b)


def _pad_to(x, rows, cols):
    return jnp.pad(x, ((0, rows - x.shape[0]), (0, cols - x.shape[1])))


def _choose_tiles(batch, tile_b):
    """Pick (tile_rows, num_tiles): 16-sublane tiles, even grid when multi-tile
    (v7x megacore: even grid => 50/50 split across the two TensorCores)."""
    tb = max(16, _round_up(min(tile_b, batch), 16))
    n = _cdiv(batch, tb)
    if n > 1 and n % 2 == 1:
        n_even = n + 1
        tb = max(16, _round_up(_cdiv(batch, n_even), 16))
        n = _cdiv(batch, tb)  # may still be odd in corner cases; perf-only
    return tb, n


# ----------------------------------------------------------------------------
# One-time parameter preparation (hoisted out of the per-call hot path)
# ----------------------------------------------------------------------------
def prepare_params(w1, b1, w2, b2, w3, b3, action_dim, *, use_bf16=True):
    """Slice the mu head, pad hidden axes to 128 lanes, cast weights to the
    MXU operand dtype.  Exact: padded weights/biases are zero, so padded
    hidden units are tanh(0)=0 and contribute nothing.

    Inputs: w* are (in_features, out_features) [transpose of torch Linear
    weight], b* are (1, out_features)."""
    hidden = w1.shape[1]
    h_p = _round_up(hidden, 128)
    wdt = jnp.bfloat16 if use_bf16 else jnp.float32

    w3_mu = w3[:, :action_dim]        # forward() only returns mu
    b3_mu = b3[:, :action_dim]

    w1_p = _pad_to(w1, w1.shape[0], h_p).astype(wdt)   # K rows stay = state_dim
    w2_p = _pad_to(w2, h_p, h_p).astype(wdt)
    w3_p = _pad_to(w3_mu, h_p, action_dim).astype(wdt)
    b1_p = _pad_to(b1, 1, h_p).astype(jnp.float32)
    b2_p = _pad_to(b2, 1, h_p).astype(jnp.float32)
    b3_p = b3_mu.astype(jnp.float32)
    return w1_p, b1_p, w2_p, b2_p, w3_p, b3_p


# ----------------------------------------------------------------------------
# Pallas kernel: one batch tile of the 3-layer MLP (matmul + bias + tanh)
# ----------------------------------------------------------------------------
def _policy_fwd_kernel(s_ref, w1_ref, b1_ref, w2_ref, b2_ref, w3_ref, b3_ref,
                       mu_ref, *, tanh_bf16):
    # Matmul operands run in the weights' dtype (bf16 by default; the MXU on
    # every gen supports bf16 with f32 accumulation).  Bias-adds are f32.
    # Hidden tanh runs in bf16 when tanh_bf16 (v6e/v7x bf16 EUP); the final,
    # action_dim-wide tanh stays f32.
    cdt = w1_ref.dtype
    tdt = jnp.bfloat16 if tanh_bf16 else jnp.float32

    x = s_ref[...].astype(cdt)                       # in-kernel cast; no wrapper copy
    h1 = jnp.tanh(
        (jnp.dot(x, w1_ref[...], preferred_element_type=jnp.float32)
         + b1_ref[...]).astype(tdt))
    h2 = jnp.tanh(
        (jnp.dot(h1.astype(cdt), w2_ref[...],
                 preferred_element_type=jnp.float32) + b2_ref[...]).astype(tdt))
    mu = jnp.tanh(
        jnp.dot(h2.astype(cdt), w3_ref[...],
                preferred_element_type=jnp.float32) + b3_ref[...])
    mu_ref[...] = mu.astype(mu_ref.dtype)


# ----------------------------------------------------------------------------
# Wrapper: batch tiling / padding, grid, pipelining
# ----------------------------------------------------------------------------
@functools.partial(jax.jit, static_argnames=("tile_b", "tanh_bf16"))
def gauss_policy_forward(s, params, *, tile_b=1024, tanh_bf16=True):
    w1, b1, w2, b2, w3, b3 = params
    batch, state_dim = s.shape
    h_p = w1.shape[1]
    action_dim = w3.shape[1]

    tb, num_tiles = _choose_tiles(batch, tile_b)
    batch_p = tb * num_tiles
    if batch_p != batch:
        # Pad only the batch axis of the un-widened (batch, state_dim) array.
        s = jnp.pad(s, ((0, batch_p - batch), (0, 0)))

    flops = 2 * batch_p * (state_dim * h_p + h_p * h_p + h_p * action_dim)
    transcendentals = batch_p * (2 * h_p + action_dim)
    bytes_accessed = (
        batch_p * state_dim * s.dtype.itemsize
        + sum(int(a.size) * a.dtype.itemsize for a in (w1, b1, w2, b2, w3, b3))
        + batch_p * action_dim * 4)

    mu_padded = pl.pallas_call(
        functools.partial(_policy_fwd_kernel, tanh_bf16=tanh_bf16),
        out_shape=jax.ShapeDtypeStruct((batch_p, action_dim), jnp.float32),
        grid_spec=pltpu.PrefetchScalarGridSpec(
            num_scalar_prefetch=0,
            grid=(num_tiles,),
            in_specs=[
                # Activations: tiled over batch, pipelined; narrow last dim
                # equals the full array dim (legal, lane-masked but tiny).
                pl.BlockSpec((tb, state_dim), lambda i: (i, 0)),
                # Weights / biases: constant block index -> loaded once,
                # VMEM-resident for the whole grid.
                pl.BlockSpec((state_dim, h_p), lambda i: (0, 0)),
                pl.BlockSpec((1, h_p), lambda i: (0, 0)),
                pl.BlockSpec((h_p, h_p), lambda i: (0, 0)),
                pl.BlockSpec((1, h_p), lambda i: (0, 0)),
                pl.BlockSpec((h_p, action_dim), lambda i: (0, 0)),
                pl.BlockSpec((1, action_dim), lambda i: (0, 0)),
            ],
            out_specs=pl.BlockSpec((tb, action_dim), lambda i: (i, 0)),
        ),
        compiler_params=pltpu.CompilerParams(
            dimension_semantics=("parallel",)),
        cost_estimate=pl.CostEstimate(
            flops=flops,
            transcendentals=transcendentals,
            bytes_accessed=bytes_accessed),
    )(s, w1, b1, w2, b2, w3, b3)

    # Strip batch padding only; the lane axis is already exactly action_dim.
    return mu_padded[:batch]


# ----------------------------------------------------------------------------
# Pure-JAX reference for correctness checking
# ----------------------------------------------------------------------------
def gauss_policy_forward_ref(s, w1, b1, w2, b2, w3, b3, action_dim):
    h1 = jnp.tanh(s @ w1 + b1)
    h2 = jnp.tanh(h1 @ w2 + b2)
    out = jnp.tanh(h2 @ w3 + b3)
    return out[:, :action_dim]


if __name__ == "__main__":
    # Small shapes consistent with the module's constructor.
    batch = 8
    state_dim = 16
    hidden_width = 32
    action_dim = 4

    key = jax.random.PRNGKey(0)
    k_params, k_in1, k_in2 = jax.random.split(key, 3)

    w1, b1, w2, b2, w3, b3 = make_params(k_params, state_dim, hidden_width,
                                         action_dim)
    s = jax.random.normal(k_in1, (batch, state_dim), jnp.float32)
    mu_ref = gauss_policy_forward_ref(s, w1, b1, w2, b2, w3, b3, action_dim)

    # f32 operands + f32 tanh path (v5e-safe reference path): tight check.
    params_f32 = prepare_params(w1, b1, w2, b2, w3, b3, action_dim,
                                use_bf16=False)
    mu_f32 = gauss_policy_forward(s, params_f32, tanh_bf16=False)
    mu_f32 = jax.block_until_ready(mu_f32)
    assert mu_f32.shape == (batch, action_dim)
    assert jnp.allclose(mu_f32, mu_ref, atol=1e-3, rtol=1e-2), "f32 mismatch"

    # Default fast path: bf16 MXU operands + bf16 hidden tanh, f32 accumulate.
    params_bf16 = prepare_params(w1, b1, w2, b2, w3, b3, action_dim,
                                 use_bf16=True)
    mu_bf16 = gauss_policy_forward(s, params_bf16, tanh_bf16=True)
    mu_bf16 = jax.block_until_ready(mu_bf16)
    assert mu_bf16.shape == (batch, action_dim)
    assert jnp.allclose(mu_bf16, mu_ref, atol=5e-3, rtol=5e-2), "bf16 mismatch"

    # Larger, non-multiple-of-tile batch: exercises batch padding, the
    # even-grid heuristic and the multi-step pipeline.
    big_batch = 1037
    s_big = jax.random.normal(k_in2, (big_batch, state_dim), jnp.float32)
    mu_big = gauss_policy_forward(s_big, params_bf16, tile_b=256,
                                  tanh_bf16=True)
    mu_big = jax.block_until_ready(mu_big)
    mu_big_ref = gauss_policy_forward_ref(s_big, w1, b1, w2, b2, w3, b3,
                                          action_dim)
    assert mu_big.shape == (big_batch, action_dim)
    assert jnp.allclose(mu_big, mu_big_ref, atol=5e-3, rtol=5e-2), \
        "batch-grid mismatch"

    # TODO(synk): get_dist() (soft_clamp of log_std + torch.distributions.Normal)
    # is not part of forward() and is not implemented here.
    print("KERNEL_OK")
</pallas_src>

<mosaic_0001>
module attributes {stable_mosaic.version = 11 : i64} {
  func.func @_policy_fwd_kernel(%arg0: i32, %arg1: memref<16x16xf32, #tpu.memory_space<vmem>>, %arg2: memref<16x128xf32, #tpu.memory_space<vmem>>, %arg3: memref<1x128xf32, #tpu.memory_space<vmem>>, %arg4: memref<128x128xf32, #tpu.memory_space<vmem>>, %arg5: memref<1x128xf32, #tpu.memory_space<vmem>>, %arg6: memref<128x4xf32, #tpu.memory_space<vmem>>, %arg7: memref<1x4xf32, #tpu.memory_space<vmem>>, %arg8: memref<16x4xf32, #tpu.memory_space<vmem>>) attributes {dimension_semantics = [#tpu.dimension_semantics<parallel>], iteration_bounds = array<i64: 1>, scalar_prefetch = 0 : i64, scratch_operands = 0 : i64, tpu.core_type = #tpu.core_type<tc>, window_params = [{transform_indices = @transform_0, window_bounds = array<i64: 16, 16>}, {pipeline_mode = #tpu.pipeline_mode<synchronous>, transform_indices = @transform_1, window_bounds = array<i64: 16, 128>}, {pipeline_mode = #tpu.pipeline_mode<synchronous>, transform_indices = @transform_2, window_bounds = array<i64: 1, 128>}, {pipeline_mode = #tpu.pipeline_mode<synchronous>, transform_indices = @transform_3, window_bounds = array<i64: 128, 128>}, {pipeline_mode = #tpu.pipeline_mode<synchronous>, transform_indices = @transform_4, window_bounds = array<i64: 1, 128>}, {pipeline_mode = #tpu.pipeline_mode<synchronous>, transform_indices = @transform_5, window_bounds = array<i64: 128, 4>}, {pipeline_mode = #tpu.pipeline_mode<synchronous>, transform_indices = @transform_6, window_bounds = array<i64: 1, 4>}, {transform_indices = @transform_7, window_bounds = array<i64: 16, 4>}]} {
    %c0 = arith.constant 0 : index
    %c0_0 = arith.constant 0 : index
    %0 = vector.load %arg1[%c0, %c0_0] : memref<16x16xf32, #tpu.memory_space<vmem>>, vector<16x16xf32>
    %c0_1 = arith.constant 0 : index
    %c0_2 = arith.constant 0 : index
    %1 = vector.load %arg2[%c0_1, %c0_2] : memref<16x128xf32, #tpu.memory_space<vmem>>, vector<16x128xf32>
    %cst = arith.constant dense<0.000000e+00> : vector<16x128xf32>
    %2 = tpu.matmul %0, %1, %cst {dimension_numbers = #tpu.dot_dimension_numbers<[1], [0], [0], [1], [0, 0, 1, 1], [], []>} : vector<16x16xf32>, vector<16x128xf32>, vector<16x128xf32> -> vector<16x128xf32>
    %c0_3 = arith.constant 0 : index
    %c0_4 = arith.constant 0 : index
    %3 = vector.load %arg3[%c0_3, %c0_4] : memref<1x128xf32, #tpu.memory_space<vmem>>, vector<1x128xf32>
    %4 = vector.broadcast %3 : vector<1x128xf32> to vector<16x128xf32>
    %5 = arith.addf %2, %4 : vector<16x128xf32>
    %6 = math.tanh %5 : vector<16x128xf32>
    %c0_5 = arith.constant 0 : index
    %c0_6 = arith.constant 0 : index
    %7 = vector.load %arg4[%c0_5, %c0_6] : memref<128x128xf32, #tpu.memory_space<vmem>>, vector<128x128xf32>
    %cst_7 = arith.constant dense<0.000000e+00> : vector<16x128xf32>
    %8 = tpu.matmul %6, %7, %cst_7 {dimension_numbers = #tpu.dot_dimension_numbers<[1], [0], [0], [1], [0, 0, 1, 1], [], []>} : vector<16x128xf32>, vector<128x128xf32>, vector<16x128xf32> -> vector<16x128xf32>
    %c0_8 = arith.constant 0 : index
    %c0_9 = arith.constant 0 : index
    %9 = vector.load %arg5[%c0_8, %c0_9] : memref<1x128xf32, #tpu.memory_space<vmem>>, vector<1x128xf32>
    %10 = vector.broadcast %9 : vector<1x128xf32> to vector<16x128xf32>
    %11 = arith.addf %8, %10 : vector<16x128xf32>
    %12 = math.tanh %11 : vector<16x128xf32>
    %c0_10 = arith.constant 0 : index
    %c0_11 = arith.constant 0 : index
    %13 = vector.load %arg6[%c0_10, %c0_11] : memref<128x4xf32, #tpu.memory_space<vmem>>, vector<128x4xf32>
    %cst_12 = arith.constant dense<0.000000e+00> : vector<16x4xf32>
    %14 = tpu.matmul %12, %13, %cst_12 {dimension_numbers = #tpu.dot_dimension_numbers<[1], [0], [0], [1], [0, 0, 1, 1], [], []>} : vector<16x128xf32>, vector<128x4xf32>, vector<16x4xf32> -> vector<16x4xf32>
    %c0_13 = arith.constant 0 : index
    %c0_14 = arith.constant 0 : index
    %15 = vector.load %arg7[%c0_13, %c0_14] : memref<1x4xf32, #tpu.memory_space<vmem>>, vector<1x4xf32>
    %16 = vector.broadcast %15 : vector<1x4xf32> to vector<16x4xf32>
    %17 = arith.addf %14, %16 : vector<16x4xf32>
    %18 = math.tanh %17 : vector<16x4xf32>
    %c0_15 = arith.constant 0 : index
    %c0_16 = arith.constant 0 : index
    %19 = vector.load %arg8[%c0_15, %c0_16] : memref<16x4xf32, #tpu.memory_space<vmem>>, vector<16x4xf32>
    tpu.vector_store %arg8[%c0_15, %c0_16], %18 {strides = array<i32>} : memref<16x4xf32, #tpu.memory_space<vmem>>, vector<16x4xf32>,
    return
  }
  func.func @transform_0(%arg0: i32) -> (i32, i32) {
    %c0_i32 = arith.constant 0 : i32
    %c0_i32_0 = arith.constant 0 : i32
    return %arg0, %c0_i32 : i32, i32
  }
  func.func @transform_1(%arg0: i32) -> (i32, i32) {
    %c0_i32 = arith.constant 0 : i32
    %c0_i32_0 = arith.constant 0 : i32
    %c0_i32_1 = arith.constant 0 : i32
    return %c0_i32, %c0_i32_0 : i32, i32
  }
  func.func @transform_2(%arg0: i32) -> (i32, i32) {
    %c0_i32 = arith.constant 0 : i32
    %c0_i32_0 = arith.constant 0 : i32
    %c0_i32_1 = arith.constant 0 : i32
    return %c0_i32, %c0_i32_0 : i32, i32
  }
  func.func @transform_3(%arg0: i32) -> (i32, i32) {
    %c0_i32 = arith.constant 0 : i32
    %c0_i32_0 = arith.constant 0 : i32
    %c0_i32_1 = arith.constant 0 : i32
    return %c0_i32, %c0_i32_0 : i32, i32
  }
  func.func @transform_4(%arg0: i32) -> (i32, i32) {
    %c0_i32 = arith.constant 0 : i32
    %c0_i32_0 = arith.constant 0 : i32
    %c0_i32_1 = arith.constant 0 : i32
    return %c0_i32, %c0_i32_0 : i32, i32
  }
  func.func @transform_5(%arg0: i32) -> (i32, i32) {
    %c0_i32 = arith.constant 0 : i32
    %c0_i32_0 = arith.constant 0 : i32
    %c0_i32_1 = arith.constant 0 : i32
    return %c0_i32, %c0_i32_0 : i32, i32
  }
  func.func @transform_6(%arg0: i32) -> (i32, i32) {
    %c0_i32 = arith.constant 0 : i32
    %c0_i32_0 = arith.constant 0 : i32
    %c0_i32_1 = arith.constant 0 : i32
    return %c0_i32, %c0_i32_0 : i32, i32
  }
  func.func @transform_7(%arg0: i32) -> (i32, i32) {
    %c0_i32 = arith.constant 0 : i32
    %c0_i32_0 = arith.constant 0 : i32
    return %arg0, %c0_i32 : i32, i32
  }
}

</mosaic_0001>

<llo_original>
// kernel: gauss_policy_forward.1
$region0: #{gauss_policy_forward.1}
  #allocation0 [shape = 'u32[]', space=smem, size = 0x4, offset = 0x4, fixed_abs, tag = 'smem constant byte address 0x4 - core index']
  #allocation1 [shape = 'u32[144,128]{1,0:T(1,128)}', space=vmem, size = 0x12000, scoped, tag = 'internal scratch']
  %s0 = inlined_call_operand.vmem [shape: f32[16,16], index: 0, kind: input, shape index: {}]
  %s1 = inlined_call_operand.vmem [shape: f32[16,128], index: 1, kind: input, shape index: {}]
  %s2 = inlined_call_operand.vmem [shape: f32[1,128], index: 2, kind: input, shape index: {}]
  %s3 = inlined_call_operand.vmem [shape: f32[128,128], index: 3, kind: input, shape index: {}]
  %s4 = inlined_call_operand.vmem [shape: f32[1,128], index: 4, kind: input, shape index: {}]
  %s5 = inlined_call_operand.vmem [shape: f32[128,4], index: 5, kind: input, shape index: {}]
  %s6 = inlined_call_operand.vmem [shape: f32[1,4], index: 6, kind: input, shape index: {}]
  %s7 = inlined_call_operand.vmem [shape: f32[16,4], index: 7, kind: output, shape index: {}]
  %s8 = sld [smem:[#allocation0]]
  $region38: #{gauss_policy_forward.1} parent=0
    _
  %s10 = ssub.s32 1, %s8
  %s11 = scalar_select 0, %s10, %s8
  // Predicated region
  $region2: #{gauss_policy_forward.1} parent=0 // pred_check
    _
  $region3: #{gauss_policy_forward.1} parent=0 // pred_check_branch
    %13 = sbr.rel (0) target = $region5
  $region4: #{gauss_policy_forward.1} parent=0 // pred_region
    _
  $region5: #{gauss_policy_forward.1} parent=0 // pred_fallthru
    _
  // Predicated region
  $region6: #{gauss_policy_forward.1} parent=0 // pred_check
    _
  $region7: #{gauss_policy_forward.1} parent=0 // pred_check_branch
    %15 = sbr.rel (0) target = $region9
  $region8: #{gauss_policy_forward.1} parent=0 // pred_region
    _
  $region9: #{gauss_policy_forward.1} parent=0 // pred_fallthru
    _
  // Predicated region
  $region10: #{gauss_policy_forward.1} parent=0 // pred_check
    _
  $region11: #{gauss_policy_forward.1} parent=0 // pred_check_branch
    %17 = sbr.rel (0) target = $region13
  $region12: #{gauss_policy_forward.1} parent=0 // pred_region
    _
  $region13: #{gauss_policy_forward.1} parent=0 // pred_fallthru
    _
  // Predicated region
  $region14: #{gauss_policy_forward.1} parent=0 // pred_check
    _
  $region15: #{gauss_policy_forward.1} parent=0 // pred_check_branch
    %19 = sbr.rel (0) target = $region17
  $region16: #{gauss_policy_forward.1} parent=0 // pred_region
    _
  $region17: #{gauss_policy_forward.1} parent=0 // pred_fallthru
    _
  // Predicated region
  $region18: #{gauss_policy_forward.1} parent=0 // pred_check
    _
  $region19: #{gauss_policy_forward.1} parent=0 // pred_check_branch
    %21 = sbr.rel (0) target = $region21
  $region20: #{gauss_policy_forward.1} parent=0 // pred_region
    _
  $region21: #{gauss_policy_forward.1} parent=0 // pred_fallthru
    _
  // Predicated region
  $region22: #{gauss_policy_forward.1} parent=0 // pred_check
    _
  $region23: #{gauss_policy_forward.1} parent=0 // pred_check_branch
    %23 = sbr.rel (0) target = $region25
  $region24: #{gauss_policy_forward.1} parent=0 // pred_region
    _
  $region25: #{gauss_policy_forward.1} parent=0 // pred_fallthru
    _
  // Predicated region
  $region26: #{gauss_policy_forward.1} parent=0 // pred_check
    _
  $region27: #{gauss_policy_forward.1} parent=0 // pred_check_branch
    %25 = sbr.rel (0) target = $region29
  $region28: #{gauss_policy_forward.1} parent=0 // pred_region
    _
  $region29: #{gauss_policy_forward.1} parent=0 // pred_fallthru
    _
  %v26 = vld [vmem:[%s0] sm:$0xff]
  %v27 = vld [vmem:[%s0 + $0x8] sm:$0xff]
  %v28 = vld [vmem:[%s1] sm:$0xff]
  %v29 = vld [vmem:[%s1 + $0x8] sm:$0xff]
  %v30 = vld [vmem:[%s2] sm:$0x1]
  %v32 = vlaneseq
  %v33 = vshrl.u32 %v32, 7
  %v34 = vsub.s32 0, %v33
  %v35 = vrot.slane %v30, %v34
  %vm37 = vcmask 130048
  %v39 = vsel %vm37, %v26, 0
  %v42 = vsel %vm37, %v27, 0
  %44 = vmatprep.subr.mxu0 0.0
  %45 = vmatpush1.msra.mxu0 %v28
  %46 = vmatprep.subr.mxu0 0.0
  %47 = vmatpush1.msra.mxu0 %v29
  %48 = vmatprep.subr.mxu0 0.0
  %49 = vmatpush1.msra.mxu0 0.0
  %50 = vmatprep.subr.mxu0 0.0
  %51 = vmatpush1.msra.mxu0 0.0
  %52 = vmatprep.subr.mxu0 0.0
  %53 = vmatpush1.msra.mxu0 0.0
  %54 = vmatprep.subr.mxu0 0.0
  %55 = vmatpush1.msra.mxu0 0.0
  %56 = vmatprep.subr.mxu0 0.0
  %57 = vmatpush1.msra.mxu0 0.0
  %58 = vmatprep.subr.mxu0 0.0
  %59 = vmatpush1.msra.mxu0 0.0
  %60 = vmatprep.subr.mxu0 0.0
  %61 = vmatpush1.msra.mxu0 0.0
  %62 = vmatprep.subr.mxu0 0.0
  %63 = vmatpush1.msra.mxu0 0.0
  %64 = vmatprep.subr.mxu0 0.0
  %65 = vmatpush1.msra.mxu0 0.0
  %66 = vmatprep.subr.mxu0 0.0
  %67 = vmatpush1.msra.mxu0 0.0
  %68 = vmatprep.subr.mxu0 0.0
  %69 = vmatpush1.msra.mxu0 0.0
  %70 = vmatprep.subr.mxu0 0.0
  %71 = vmatpush1.msra.mxu0 0.0
  %72 = vmatprep.subr.mxu0 0.0
  %73 = vmatpush1.msra.mxu0 0.0
  %74 = vmatprep.subr.mxu0 0.0
  %75 = vmatpush1.msra.mxu0 0.0
  %76 = vmatprep.subr.mxu0 0.0
  %77 = vmatpush1.msra.mxu0 0.0
  %78 = vmatprep.subr.mxu0 0.0
  %79 = vmatpush1.msra.mxu0 0.0
  %80 = vmatprep.subr.mxu0 0.0
  %81 = vmatpush1.msra.mxu0 0.0
  %82 = vmatprep.subr.mxu0 0.0
  %83 = vmatpush1.msra.mxu0 0.0
  %84 = vmatprep.subr.mxu0 0.0
  %85 = vmatpush1.msra.mxu0 0.0
  %86 = vmatprep.subr.mxu0 0.0
  %87 = vmatpush1.msra.mxu0 0.0
  %88 = vmatprep.subr.mxu0 0.0
  %89 = vmatpush1.msra.mxu0 0.0
  %90 = vmatprep.subr.mxu0 0.0
  %91 = vmatpush1.msra.mxu0 0.0
  %92 = vmatprep.subr.mxu0 0.0
  %93 = vmatpush1.msra.mxu0 0.0
  %94 = vmatprep.subr.mxu0 0.0
  %95 = vmatpush1.msra.mxu0 0.0
  %96 = vmatprep.subr.mxu0 0.0
  %97 = vmatpush1.msra.mxu0 0.0
  %98 = vmatprep.subr.mxu0 0.0
  %99 = vmatpush1.msra.mxu0 0.0
  %100 = vmatprep.subr.mxu0 0.0
  %101 = vmatpush1.msra.mxu0 0.0
  %102 = vmatprep.subr.mxu0 0.0
  %103 = vmatpush1.msra.mxu0 0.0
  %104 = vmatprep.subr.mxu0 0.0
  %105 = vmatpush1.msra.mxu0 0.0
  %106 = vmatprep.subr.mxu0 0.0
  %107 = vmatpush1.msra.mxu0 0.0
  %108 = vmatprep.mubr.f32.mxu0 0.0
  %109 = vmatmul.mubr.f32.gmra.mrb[0].mxu0 %v39
  %v110 = vpop.f32.mrb[0].mxu0
  %v111 = vadd.f32 %v35, %v110
  %v112 = vpop.f32.mrb[0].mxu0
  %113 = vmatprep.mubr.f32.mxu0 0.0
  %114 = vmatmul.mubr.f32.gmra.mrb[0].mxu0 %v42
  %v115 = vpop.f32.mrb[0].mxu0
  %v116 = vadd.f32 %v35, %v115
  %v117 = vpop.f32.mrb[0].mxu0
  %118 = vdwg.mxu0
  %v119 = vtanh.pop %v111
  %v120 = vtanh.pop %v116
  %v121 = vld [vmem:[%s3] sm:$0xff]
  %v122 = vld [vmem:[%s3 + $0x8] sm:$0xff]
  %v123 = vld [vmem:[%s3 + $0x10] sm:$0xff]
  %v124 = vld [vmem:[%s3 + $0x18] sm:$0xff]
  %v125 = vld [vmem:[%s3 + $0x20] sm:$0xff]
  %v126 = vld [vmem:[%s3 + $0x28] sm:$0xff]
  %v127 = vld [vmem:[%s3 + $0x30] sm:$0xff]
  %v128 = vld [vmem:[%s3 + $0x38] sm:$0xff]
  %v129 = vld [vmem:[%s3 + $0x40] sm:$0xff]
  %v130 = vld [vmem:[%s3 + $0x48] sm:$0xff]
  %v131 = vld [vmem:[%s3 + $0x50] sm:$0xff]
  %v132 = vld [vmem:[%s3 + $0x58] sm:$0xff]
  %v133 = vld [vmem:[%s3 + $0x60] sm:$0xff]
  %v134 = vld [vmem:[%s3 + $0x68] sm:$0xff]
  %v135 = vld [vmem:[%s3 + $0x70] sm:$0xff]
  %v136 = vld [vmem:[%s3 + $0x78] sm:$0xff]
  %v137 = vld [vmem:[%s4] sm:$0x1]
  %v139 = vlaneseq
  %v140 = vshrl.u32 %v139, 7
  %v141 = vsub.s32 0, %v140
  %v142 = vrot.slane %v137, %v141
  %144 = vmatprep.subr.mxu0 0.0
  %145 = vmatpush1.msra.mxu0 %v121
  %146 = vmatprep.subr.mxu0 0.0
  %147 = vmatpush1.msra.mxu0 %v122
  %148 = vmatprep.subr.mxu0 0.0
  %149 = vmatpush1.msra.mxu0 %v123
  %150 = vmatprep.subr.mxu0 0.0
  %151 = vmatpush1.msra.mxu0 %v124
  %152 = vmatprep.subr.mxu0 0.0
  %153 = vmatpush1.msra.mxu0 %v125
  %154 = vmatprep.subr.mxu0 0.0
  %155 = vmatpush1.msra.mxu0 %v126
  %156 = vmatprep.subr.mxu0 0.0
  %157 = vmatpush1.msra.mxu0 %v127
  %158 = vmatprep.subr.mxu0 0.0
  %159 = vmatpush1.msra.mxu0 %v128
  %160 = vmatprep.subr.mxu0 0.0
  %161 = vmatpush1.msra.mxu0 %v129
  %162 = vmatprep.subr.mxu0 0.0
  %163 = vmatpush1.msra.mxu0 %v130
  %164 = vmatprep.subr.mxu0 0.0
  %165 = vmatpush1.msra.mxu0 %v131
  %166 = vmatprep.subr.mxu0 0.0
  %167 = vmatpush1.msra.mxu0 %v132
  %168 = vmatprep.subr.mxu0 0.0
  %169 = vmatpush1.msra.mxu0 %v133
  %170 = vmatprep.subr.mxu0 0.0
  %171 = vmatpush1.msra.mxu0 %v134
  %172 = vmatprep.subr.mxu0 0.0
  %173 = vmatpush1.msra.mxu0 %v135
  %174 = vmatprep.subr.mxu0 0.0
  %175 = vmatpush1.msra.mxu0 %v136
  %176 = vmatprep.subr.mxu0 0.0
  %177 = vmatpush1.msra.mxu0 0.0
  %178 = vmatprep.subr.mxu0 0.0
  %179 = vmatpush1.msra.mxu0 0.0
  %180 = vmatprep.subr.mxu0 0.0
  %181 = vmatpush1.msra.mxu0 0.0
  %182 = vmatprep.subr.mxu0 0.0
  %183 = vmatpush1.msra.mxu0 0.0
  %184 = vmatprep.subr.mxu0 0.0
  %185 = vmatpush1.msra.mxu0 0.0
  %186 = vmatprep.subr.mxu0 0.0
  %187 = vmatpush1.msra.mxu0 0.0
  %188 = vmatprep.subr.mxu0 0.0
  %189 = vmatpush1.msra.mxu0 0.0
  %190 = vmatprep.subr.mxu0 0.0
  %191 = vmatpush1.msra.mxu0 0.0
  %192 = vmatprep.subr.mxu0 0.0
  %193 = vmatpush1.msra.mxu0 0.0
  %194 = vmatprep.subr.mxu0 0.0
  %195 = vmatpush1.msra.mxu0 0.0
  %196 = vmatprep.subr.mxu0 0.0
  %197 = vmatpush1.msra.mxu0 0.0
  %198 = vmatprep.subr.mxu0 0.0
  %199 = vmatpush1.msra.mxu0 0.0
  %200 = vmatprep.subr.mxu0 0.0
  %201 = vmatpush1.msra.mxu0 0.0
  %202 = vmatprep.subr.mxu0 0.0
  %203 = vmatpush1.msra.mxu0 0.0
  %204 = vmatprep.subr.mxu0 0.0
  %205 = vmatpush1.msra.mxu0 0.0
  %206 = vmatprep.subr.mxu0 0.0
  %207 = vmatpush1.msra.mxu0 0.0
  %208 = vmatprep.mubr.f32.mxu0 0.0
  %209 = vmatmul.mubr.f32.gmra.mrb[0].mxu0 %v119
  %v210 = vpop.f32.mrb[0].mxu0
  %v211 = vadd.f32 %v142, %v210
  %v212 = vpop.f32.mrb[0].mxu0
  %213 = vmatprep.mubr.f32.mxu0 0.0
  %214 = vmatmul.mubr.f32.gmra.mrb[0].mxu0 %v120
  %v215 = vpop.f32.mrb[0].mxu0
  %v216 = vadd.f32 %v142, %v215
  %v217 = vpop.f32.mrb[0].mxu0
  %218 = vdwg.mxu0
  %v219 = vtanh.pop %v211
  %v220 = vtanh.pop %v216
  %v221 = vld [vmem:[%s5] sm:$0xff]
  %v222 = vld [vmem:[%s5 + $0x8] sm:$0xff]
  %v223 = vld [vmem:[%s5 + $0x10] sm:$0xff]
  %v224 = vld [vmem:[%s5 + $0x18] sm:$0xff]
  %v225 = vld [vmem:[%s5 + $0x20] sm:$0xff]
  %v226 = vld [vmem:[%s5 + $0x28] sm:$0xff]
  %v227 = vld [vmem:[%s5 + $0x30] sm:$0xff]
  %v228 = vld [vmem:[%s5 + $0x38] sm:$0xff]
  %v229 = vld [vmem:[%s5 + $0x40] sm:$0xff]
  %v230 = vld [vmem:[%s5 + $0x48] sm:$0xff]
  %v231 = vld [vmem:[%s5 + $0x50] sm:$0xff]
  %v232 = vld [vmem:[%s5 + $0x58] sm:$0xff]
  %v233 = vld [vmem:[%s5 + $0x60] sm:$0xff]
  %v234 = vld [vmem:[%s5 + $0x68] sm:$0xff]
  %v235 = vld [vmem:[%s5 + $0x70] sm:$0xff]
  %v236 = vld [vmem:[%s5 + $0x78] sm:$0xff]
  %v237 = vld [vmem:[%s6] sm:$0x1]
  %v239 = vlaneseq
  %v240 = vshrl.u32 %v239, 7
  %v241 = vsub.s32 0, %v240
  %v242 = vrot.slane %v237, %v241
  %244 = vmatprep.subr.mxu0 0.0
  %245 = vmatpush1.msra.mxu0 %v221
  %246 = vmatprep.subr.mxu0 0.0
  %247 = vmatpush1.msra.mxu0 %v222
  %248 = vmatprep.subr.mxu0 0.0
  %249 = vmatpush1.msra.mxu0 %v223
  %250 = vmatprep.subr.mxu0 0.0
  %251 = vmatpush1.msra.mxu0 %v224
  %252 = vmatprep.subr.mxu0 0.0
  %253 = vmatpush1.msra.mxu0 %v225
  %254 = vmatprep.subr.mxu0 0.0
  %255 = vmatpush1.msra.mxu0 %v226
  %256 = vmatprep.subr.mxu0 0.0
  %257 = vmatpush1.msra.mxu0 %v227
  %258 = vmatprep.subr.mxu0 0.0
  %259 = vmatpush1.msra.mxu0 %v228
  %260 = vmatprep.subr.mxu0 0.0
  %261 = vmatpush1.msra.mxu0 %v229
  %262 = vmatprep.subr.mxu0 0.0
  %263 = vmatpush1.msra.mxu0 %v230
  %264 = vmatprep.subr.mxu0 0.0
  %265 = vmatpush1.msra.mxu0 %v231
  %266 = vmatprep.subr.mxu0 0.0
  %267 = vmatpush1.msra.mxu0 %v232
  %268 = vmatprep.subr.mxu0 0.0
  %269 = vmatpush1.msra.mxu0 %v233
  %270 = vmatprep.subr.mxu0 0.0
  %271 = vmatpush1.msra.mxu0 %v234
  %272 = vmatprep.subr.mxu0 0.0
  %273 = vmatpush1.msra.mxu0 %v235
  %274 = vmatprep.subr.mxu0 0.0
  %275 = vmatpush1.msra.mxu0 %v236
  %276 = vmatprep.subr.mxu0 0.0
  %277 = vmatpush1.msra.mxu0 0.0
  %278 = vmatprep.subr.mxu0 0.0
  %279 = vmatpush1.msra.mxu0 0.0
  %280 = vmatprep.subr.mxu0 0.0
  %281 = vmatpush1.msra.mxu0 0.0
  %282 = vmatprep.subr.mxu0 0.0
  %283 = vmatpush1.msra.mxu0 0.0
  %284 = vmatprep.subr.mxu0 0.0
  %285 = vmatpush1.msra.mxu0 0.0
  %286 = vmatprep.subr.mxu0 0.0
  %287 = vmatpush1.msra.mxu0 0.0
  %288 = vmatprep.subr.mxu0 0.0
  %289 = vmatpush1.msra.mxu0 0.0
  %290 = vmatprep.subr.mxu0 0.0
  %291 = vmatpush1.msra.mxu0 0.0
  %292 = vmatprep.subr.mxu0 0.0
  %293 = vmatpush1.msra.mxu0 0.0
  %294 = vmatprep.subr.mxu0 0.0
  %295 = vmatpush1.msra.mxu0 0.0
  %296 = vmatprep.subr.mxu0 0.0
  %297 = vmatpush1.msra.mxu0 0.0
  %298 = vmatprep.subr.mxu0 0.0
  %299 = vmatpush1.msra.mxu0 0.0
  %300 = vmatprep.subr.mxu0 0.0
  %301 = vmatpush1.msra.mxu0 0.0
  %302 = vmatprep.subr.mxu0 0.0
  %303 = vmatpush1.msra.mxu0 0.0
  %304 = vmatprep.subr.mxu0 0.0
  %305 = vmatpush1.msra.mxu0 0.0
  %306 = vmatprep.subr.mxu0 0.0
  %307 = vmatpush1.msra.mxu0 0.0
  %308 = vmatprep.mubr.f32.mxu0 0.0
  %309 = vmatmul.mubr.f32.gmra.mrb[0].mxu0 %v219
  %v310 = vpop.f32.mrb[0].mxu0
  %v311 = vadd.f32 %v242, %v310
  %v312 = vpop.f32.mrb[0].mxu0
  %313 = vmatprep.mubr.f32.mxu0 0.0
  %314 = vmatmul.mubr.f32.gmra.mrb[0].mxu0 %v220
  %v315 = vpop.f32.mrb[0].mxu0
  %v316 = vadd.f32 %v242, %v315
  %v317 = vpop.f32.mrb[0].mxu0
  %318 = vdwg.mxu0
  %v319 = vtanh.pop %v311
  %v320 = vtanh.pop %v316
  %vm321 = vcmask 31744
  %322 = vst.msk [vmem:[%s7] sm:$0xff] %vm321, %v319
  %323 = vst.msk [vmem:[%s7 + $0x8] sm:$0xff] %vm321, %v320
  // Predicated region
  $region30: #{gauss_policy_forward.1} parent=0 // pred_check
    _
  $region31: #{gauss_policy_forward.1} parent=0 // pred_check_branch
    %325 = sbr.rel (0) target = $region33
  $region32: #{gauss_policy_forward.1} parent=0 // pred_region
    _
  $region33: #{gauss_policy_forward.1} parent=0 // pred_fallthru
    _
  // Predicated region
  $region34: #{gauss_policy_forward.1} parent=0 // pred_check
    _
  $region35: #{gauss_policy_forward.1} parent=0 // pred_check_branch
    %327 = sbr.rel (0) target = $region37
  $region36: #{gauss_policy_forward.1} parent=0 // pred_region
    _
  $region37: #{gauss_policy_forward.1} parent=0 // pred_fallthru
    _

</llo_original>
